<compile_context>
chip_gen: v7x
topology: tpu7x:2x2x1
jax: 0.10.0
libtpu: 0.0.40
codegen_flags: <defaults>
</compile_context>

<pallas_src>
import jax
import jax.numpy as jnp
from jax.experimental import pallas as pl
from jax.experimental.pallas import tpu as pltpu

LANE = 128


def _round_up(x: int, m: int) -> int:
    return ((x + m - 1) // m) * m


def _sdf_sphere_kernel(radius_ref, q_ref, o_ref):
    # radius_ref: (1,)            f32 scalar in SMEM
    # q_ref:      (D, BR, 128)    component-major block of query positions (VMEM)
    # o_ref:      (BR, 128)       lane-dense block of signed distances (VMEM)
    D = q_ref.shape[0]
    comp = q_ref[0].astype(jnp.float32)
    sq = comp * comp
    for d in range(1, D):            # D is static (e.g. 3) -> unrolled VPU mul/add
        comp = q_ref[d].astype(jnp.float32)
        sq = sq + comp * comp
    # sqrt goes to the EUP (separate bundle slot); subtract is one VPU op.
    o_ref[...] = (jnp.sqrt(sq) - radius_ref[0]).astype(o_ref.dtype)


def sdf_sphere(query_positions: jax.Array, radius: jax.Array, *, tile_rows: int = 1024):
    """Pallas TPU implementation of SDFSphere.forward.

    query_positions: (..., D) float array of query points
    radius:          scalar float array (the nn.Parameter)
    returns:         (..., 1) signed distance, same dtype as query_positions
    """
    orig_shape = query_positions.shape
    D = orig_shape[-1]
    q2d = query_positions.reshape(-1, D)
    N = q2d.shape[0]

    # Lane-dense row layout: N points -> rows of 128 lanes.
    rows = pl.cdiv(N, LANE)
    block_rows = min(tile_rows, _round_up(rows, 8))   # sublane-aligned block
    rows_p = _round_up(rows, block_rows)
    Np = rows_p * LANE

    # Component-major repack (one fused XLA transpose/pad/reshape):
    #   (N, D) -> (D, rows_p, 128).
    # Padded tail lanes compute sqrt(0) - radius and are sliced off below.
    q_cm = q2d.T
    pad = Np - N
    if pad:
        q_cm = jnp.pad(q_cm, ((0, 0), (0, pad)))
    q_cm = q_cm.reshape(D, rows_p, LANE)

    radius_smem = jnp.asarray(radius, dtype=jnp.float32).reshape(1)

    out = pl.pallas_call(
        _sdf_sphere_kernel,
        out_shape=jax.ShapeDtypeStruct((rows_p, LANE), query_positions.dtype),
        grid_spec=pltpu.PrefetchScalarGridSpec(
            num_scalar_prefetch=0,
            grid=(rows_p // block_rows,),
            in_specs=[
                pl.BlockSpec(memory_space=pltpu.SMEM),                      # radius scalar
                pl.BlockSpec((D, block_rows, LANE), lambda i: (0, i, 0)),   # xyz slab
            ],
            out_specs=pl.BlockSpec((block_rows, LANE), lambda i: (i, 0)),   # lane-dense out
        ),
        compiler_params=pltpu.CompilerParams(
            dimension_semantics=("parallel",)),
    )(radius_smem, q_cm)

    out = out.reshape(Np)[:N]
    return out.reshape(*orig_shape[:-1], 1)


if __name__ == "__main__":
    key = jax.random.PRNGKey(0)

    # Small shapes consistent with the module: a batch of 3-D query points.
    B, N, D = 2, 128, 3
    query_positions = jax.random.normal(key, (B, N, D), dtype=jnp.float32)

    # Deterministic parameter init (radius), as in SDFSphere(radius=0.5).
    radius = jnp.float32(0.5)

    sd = sdf_sphere(query_positions, radius)
    sd = jax.block_until_ready(sd)

    # Reference check against plain JAX (mirrors the PyTorch forward).
    ref = jnp.linalg.norm(query_positions, axis=-1, keepdims=True) - radius
    assert sd.shape == (B, N, 1), sd.shape
    assert jnp.allclose(sd, ref, atol=1e-5, rtol=1e-5), float(jnp.max(jnp.abs(sd - ref)))

    print("KERNEL_OK")
</pallas_src>

<mosaic_0001>
module attributes {stable_mosaic.version = 11 : i64} {
  func.func @_sdf_sphere_kernel(%arg0: i32, %arg1: memref<1xf32, #tpu.memory_space<smem>>, %arg2: memref<3x8x128xf32, #tpu.memory_space<vmem>>, %arg3: memref<8x128xf32, #tpu.memory_space<vmem>>) attributes {dimension_semantics = [#tpu.dimension_semantics<parallel>], iteration_bounds = array<i64: 1>, scalar_prefetch = 0 : i64, scratch_operands = 0 : i64, tpu.core_type = #tpu.core_type<tc>, window_params = [{transform_indices = @transform_0, window_bounds = array<i64: 1>}, {transform_indices = @transform_1, window_bounds = array<i64: 3, 8, 128>}, {transform_indices = @transform_2, window_bounds = array<i64: 8, 128>}]} {
    %c0 = arith.constant 0 : index
    %c0_0 = arith.constant 0 : index
    %c0_1 = arith.constant 0 : index
    %0 = vector.load %arg2[%c0, %c0_0, %c0_1] : memref<3x8x128xf32, #tpu.memory_space<vmem>>, vector<1x8x128xf32>
    %1 = vector.shape_cast %0 : vector<1x8x128xf32> to vector<8x128xf32>
    %2 = arith.mulf %1, %1 : vector<8x128xf32>
    %c1 = arith.constant 1 : index
    %c0_2 = arith.constant 0 : index
    %c0_3 = arith.constant 0 : index
    %3 = vector.load %arg2[%c1, %c0_2, %c0_3] : memref<3x8x128xf32, #tpu.memory_space<vmem>>, vector<1x8x128xf32>
    %4 = vector.shape_cast %3 : vector<1x8x128xf32> to vector<8x128xf32>
    %5 = arith.mulf %4, %4 : vector<8x128xf32>
    %6 = arith.addf %2, %5 : vector<8x128xf32>
    %c2 = arith.constant 2 : index
    %c0_4 = arith.constant 0 : index
    %c0_5 = arith.constant 0 : index
    %7 = vector.load %arg2[%c2, %c0_4, %c0_5] : memref<3x8x128xf32, #tpu.memory_space<vmem>>, vector<1x8x128xf32>
    %8 = vector.shape_cast %7 : vector<1x8x128xf32> to vector<8x128xf32>
    %9 = arith.mulf %8, %8 : vector<8x128xf32>
    %10 = arith.addf %6, %9 : vector<8x128xf32>
    %11 = math.sqrt %10 : vector<8x128xf32>
    %c0_6 = arith.constant 0 : index
    %12 = memref.load %arg1[%c0_6] : memref<1xf32, #tpu.memory_space<smem>>
    %13 = vector.broadcast %12 : f32 to vector<8x128xf32>
    %14 = arith.subf %11, %13 : vector<8x128xf32>
    %c0_7 = arith.constant 0 : index
    %c0_8 = arith.constant 0 : index
    %15 = vector.load %arg3[%c0_7, %c0_8] : memref<8x128xf32, #tpu.memory_space<vmem>>, vector<8x128xf32>
    tpu.vector_store %arg3[%c0_7, %c0_8], %14 {strides = array<i32>} : memref<8x128xf32, #tpu.memory_space<vmem>>, vector<8x128xf32>,
    return
  }
  func.func @transform_0(%arg0: i32) -> i32 {
    %c0_i32 = arith.constant 0 : i32
    %c0_i32_0 = arith.constant 0 : i32
    return %c0_i32 : i32
  }
  func.func @transform_1(%arg0: i32) -> (i32, i32, i32) {
    %c0_i32 = arith.constant 0 : i32
    %c0_i32_0 = arith.constant 0 : i32
    %c0_i32_1 = arith.constant 0 : i32
    return %c0_i32, %arg0, %c0_i32_0 : i32, i32, i32
  }
  func.func @transform_2(%arg0: i32) -> (i32, i32) {
    %c0_i32 = arith.constant 0 : i32
    %c0_i32_0 = arith.constant 0 : i32
    return %arg0, %c0_i32 : i32, i32
  }
}

</mosaic_0001>

<llo_original>
// kernel: tpu_custom_call.1
$region0: #{tpu_custom_call.1}
  #allocation0 [shape = 'u32[]', space=smem, size = 0x4, offset = 0x4, fixed_abs, tag = 'smem constant byte address 0x4 - core index']
  #allocation1 [shape = 'u32[144,128]{1,0:T(1,128)}', space=vmem, size = 0x12000, scoped, tag = 'internal scratch']
  #allocation2 [shape = 'f32[1]{0:T(128)S(6)}', space=smem, size = 0x200, scoped, tag = 'scoped memory for tpu_custom_call.1']
  %s0 = inlined_call_operand.<no memory space> [shape: f32[1], index: 0, kind: input, shape index: {}]
  %s1 = inlined_call_operand.hbm [shape: f32[3,8,128], index: 1, kind: input, shape index: {}]
  %s2 = inlined_call_operand.hbm [shape: f32[8,128], index: 2, kind: output, shape index: {}]
  %s3 = sld [smem:[#allocation0]]
  $region22: #{tpu_custom_call.1} parent=0
    _
  %s5 = ssub.s32 1, %s3
  %s6 = scalar_select 0, %s5, %s3
  %7 = sst [smem:[#allocation2]] %s0
  $region1: #{tpu_custom_call.1} parent=0
    #allocation3 [shape = 'u8[12288]{0}', space=vmem, size = 0x3000, scoped, tag = 'input window, operand 1, single buffered']
    #allocation4 [shape = 's32[1]{0}', space=sflag, size = 0x4, scoped, tag = 'scoped memory for tpu_custom_call.1']
    #allocation5 [shape = 's32[1]{0}', space=sflag, size = 0x4, scoped, tag = 'scoped memory for tpu_custom_call.1']
    #allocation6 [shape = 'u8[4096]{0}', space=vmem, size = 0x1000, scoped, tag = 'output window, operand 0, single buffered']
    %8 = vsyncpa [#allocation4], 0
    %9 = vsyncpa [#allocation5], 0
    // Predicated region
    $region2: #{tpu_custom_call.1} parent=1 // pred_check
      _
    $region3: #{tpu_custom_call.1} parent=1 // pred_check_branch
      %11 = sbr.rel (0) target = $region5
    $region4: #{tpu_custom_call.1} parent=1 // pred_region
      _
    $region5: #{tpu_custom_call.1} parent=1 // pred_fallthru
      _
    // Predicated region
    $region6: #{tpu_custom_call.1} parent=1 // pred_check
      _
    $region7: #{tpu_custom_call.1} parent=1 // pred_check_branch
      %13 = sbr.rel (0) target = $region9
    $region8: #{tpu_custom_call.1} parent=1 // pred_region
      %s15 = ssub.s32 384, 384
      %16 = vsyncadd [#allocation4], %s15
      %s17 = sshll.u32 [#allocation3], 4
      %s18 = int_to_ptr.vmem [resolvable:$true] %s17
      %23 = dma.hbm_to_vmem [thread:$0]  %s1, 384, %s18, [#allocation4], 128, 128, 8
    $region9: #{tpu_custom_call.1} parent=1 // pred_fallthru
      _
    // Predicated region
    $region10: #{tpu_custom_call.1} parent=1 // pred_check
      _
    $region11: #{tpu_custom_call.1} parent=1 // pred_check_branch
      %25 = sbr.rel (0) target = $region13
    $region12: #{tpu_custom_call.1} parent=1 // pred_region
      %26 = dma.done [#allocation4], 384
    $region13: #{tpu_custom_call.1} parent=1 // pred_fallthru
      _
    %v27 = vld [vmem:[#allocation3] sm:$0xff]
    %v28 = vmul.f32 %v27, %v27
    %s29 = scalar_lea.vmem [#allocation3], 8
    %v30 = vld [vmem:[%s29] sm:$0xff]
    %v31 = vmul.f32 %v30, %v30
    %v32 = vadd.f32 %v28, %v31
    %s33 = scalar_lea.vmem [#allocation3], 16
    %v34 = vld [vmem:[%s33] sm:$0xff]
    %v35 = vmul.f32 %v34, %v34
    %v36 = vadd.f32 %v32, %v35
    %v37 = vrsqrt.pop %v36
    %v38 = vmul.f32 %v36, %v37
    %vm39 = vcmp.eq.f32.partialorder %v36, inf
    %v40 = vsel %vm39, %v36, %v38
    %vm41 = vcmp.eq.f32.partialorder %v36, 0.0
    %v42 = vand.u32 %v36, 2147483648
    %v43 = vsel %vm41, %v42, %v40
    %s44 = sld [smem:[#allocation2]]
    %v45 = vstv %s44
    %v46 = vsub.f32 %v43, %v45
    %47 = vst [vmem:[#allocation6] sm:$0xff] %v46
    // Predicated region
    $region14: #{tpu_custom_call.1} parent=1 // pred_check
      _
    $region15: #{tpu_custom_call.1} parent=1 // pred_check_branch
      %49 = sbr.rel (0) target = $region17
    $region16: #{tpu_custom_call.1} parent=1 // pred_region
      %s51 = ssub.s32 128, 128
      %52 = vsyncadd [#allocation5], %s51
      %s54 = sshll.u32 [#allocation6], 4
      %s55 = int_to_ptr.vmem [resolvable:$true] %s54
      %57 = dma.vmem_to_hbm [thread:$0]  %s55, 128, %s2, [#allocation5]
    $region17: #{tpu_custom_call.1} parent=1 // pred_fallthru
      _
    // Predicated region
    $region18: #{tpu_custom_call.1} parent=1 // pred_check
      _
    $region19: #{tpu_custom_call.1} parent=1 // pred_check_branch
      %59 = sbr.rel (0) target = $region21
    $region20: #{tpu_custom_call.1} parent=1 // pred_region
      %60 = dma.done [#allocation5], 128
    $region21: #{tpu_custom_call.1} parent=1 // pred_fallthru
      _
    %61 = vsyncpa [#allocation4], 1
    %62 = vsyncpa [#allocation5], 1

</llo_original>
